<compile_context>
chip_gen: v5e
topology: v5e:2x2
jax: 0.10.0
libtpu: 0.0.40
codegen_flags: <defaults>
</compile_context>

<pallas_src>
import math

import jax
import jax.numpy as jnp
import numpy as np
from jax.experimental import pallas as pl
from jax.experimental.pallas import tpu as pltpu

# Module constants — folded at trace time.
_ALPHA = 1.0
_X0 = 5.0 / 2.0 * math.pi
_BETA = _ALPHA / (2.0 * _X0 ** 2)
_INV_DENOM = 1.0 / (_ALPHA ** 2 / (4.0 * _BETA))   # = 1 / (x0^2 / 2)
_BOUND = 15.0


def _curvy_valley_kernel(loc_ref, new_loc_ref, loss_ref):
    # loc_ref: (1, dims) f32 VMEM tile.  Grid-less single invocation; the whole
    # working set fits in one vreg, so everything below is VPU/EUP lane math.
    loc = jnp.clip(loc_ref[...], -_BOUND, _BOUND)          # in-place clamp
    new_loc_ref[...] = loc

    # Split lane 0 (x) and lane 1 (y) into (1, 1) values without any
    # vector->scalar extraction: mask + lane reduce stays on the vector path.
    lane = jax.lax.broadcasted_iota(jnp.int32, loc.shape, 1)
    x = jnp.sum(jnp.where(lane == 0, loc, 0.0), axis=1, keepdims=True)
    y = jnp.sum(jnp.where(lane == 1, loc, 0.0), axis=1, keepdims=True)

    d = y - jnp.sin(x)
    curvy = d * d

    x2 = x * x
    x4 = x2 * x2
    bounding = (_BETA * x4 - _ALPHA * x2) * _INV_DENOM + 1.0

    loss_ref[...] = curvy + bounding


def curvy_valley_forward(location):
    """Pallas equivalent of CurvyValley.forward().

    Args:
      location: f32[dims] parameter vector (the module uses dims=2).

    Returns:
      (loss, new_location): scalar f32 loss and the clamped location vector
      (functional counterpart of the in-place clamp on location.data).
    """
    dims = location.shape[0]
    loc2d = location.astype(jnp.float32).reshape(1, dims)

    new_loc2d, loss2d = pl.pallas_call(
        _curvy_valley_kernel,
        out_shape=(
            jax.ShapeDtypeStruct((1, dims), jnp.float32),   # clamped location
            jax.ShapeDtypeStruct((1, 1), jnp.float32),      # loss
        ),
        in_specs=[pl.BlockSpec(memory_space=pltpu.VMEM)],
        out_specs=(
            pl.BlockSpec(memory_space=pltpu.VMEM),
            pl.BlockSpec(memory_space=pltpu.VMEM),
        ),
    )(loc2d)

    return loss2d[0, 0], new_loc2d.reshape(dims)


def _reference(location):
    """Plain-JAX reference with identical semantics."""
    loc = jnp.clip(location.astype(jnp.float32), -_BOUND, _BOUND)
    x, y = loc[0], loc[1]
    curvy = (y - jnp.sin(x)) ** 2
    bounding = (_BETA * x ** 4 - _ALPHA * x ** 2) * _INV_DENOM + 1.0
    return curvy + bounding, loc


if __name__ == "__main__":
    key = jax.random.PRNGKey(0)
    k1, k2 = jax.random.split(key)
    dims = 2

    # Case 1: mimic initialise_randomly(): uniform(0, 2), then shift x by -x0.
    loc_a = jax.random.uniform(k1, (dims,), dtype=jnp.float32) * 2.0
    loc_a = loc_a.at[0].add(-_X0)

    # Case 2: out-of-bound values to exercise the in-place clamp path.
    loc_b = jax.random.uniform(k2, (dims,), dtype=jnp.float32,
                               minval=-25.0, maxval=25.0)

    for loc in (loc_a, loc_b):
        loss, new_loc = curvy_valley_forward(loc)
        loss = jax.block_until_ready(loss)
        new_loc = jax.block_until_ready(new_loc)

        ref_loss, ref_loc = _reference(loc)
        np.testing.assert_allclose(np.asarray(loss), np.asarray(ref_loss),
                                   rtol=1e-3, atol=1e-3)
        np.testing.assert_allclose(np.asarray(new_loc), np.asarray(ref_loc),
                                   rtol=1e-6, atol=1e-6)

    print("KERNEL_OK")
</pallas_src>

<mosaic_0001>
module attributes {stable_mosaic.version = 11 : i64} {
  func.func @_curvy_valley_kernel(%arg0: memref<1x2xf32, #tpu.memory_space<vmem>>, %arg1: memref<1x2xf32, #tpu.memory_space<vmem>>, %arg2: memref<1x1xf32, #tpu.memory_space<vmem>>) attributes {dimension_semantics = [], scalar_prefetch = 0 : i64, scratch_operands = 0 : i64, tpu.core_type = #tpu.core_type<tc>} {
    %c0 = arith.constant 0 : index
    %c0_0 = arith.constant 0 : index
    %0 = vector.load %arg0[%c0, %c0_0] : memref<1x2xf32, #tpu.memory_space<vmem>>, vector<1x2xf32>
    %cst = arith.constant -1.500000e+01 : f32
    %cst_1 = arith.constant 1.500000e+01 : f32
    %1 = vector.broadcast %cst : f32 to vector<1x2xf32>
    %2 = arith.maximumf %1, %0 : vector<1x2xf32>
    %3 = vector.broadcast %cst_1 : f32 to vector<1x2xf32>
    %4 = arith.minimumf %3, %2 : vector<1x2xf32>
    %c0_2 = arith.constant 0 : index
    %c0_3 = arith.constant 0 : index
    %5 = vector.load %arg1[%c0_2, %c0_3] : memref<1x2xf32, #tpu.memory_space<vmem>>, vector<1x2xf32>
    tpu.vector_store %arg1[%c0_2, %c0_3], %4 {strides = array<i32>} : memref<1x2xf32, #tpu.memory_space<vmem>>, vector<1x2xf32>,
    %6 = tpu.iota {dimensions = array<i32: 1>} : vector<1x2xi32>
    %c0_i32 = arith.constant 0 : i32
    %7 = vector.broadcast %c0_i32 : i32 to vector<1x2xi32>
    %8 = arith.cmpi eq, %6, %7 : vector<1x2xi32>
    %cst_4 = arith.constant 0.000000e+00 : f32
    %9 = vector.broadcast %cst_4 : f32 to vector<1x2xf32>
    %10 = arith.select %8, %4, %9 : vector<1x2xi1>, vector<1x2xf32>
    %cst_5 = arith.constant dense<0.000000e+00> : vector<1xf32>
    %11 = vector.multi_reduction <add>, %10, %cst_5 [1] : vector<1x2xf32> to vector<1xf32>
    %12 = vector.shape_cast %11 : vector<1xf32> to vector<1x1xf32>
    %c1_i32 = arith.constant 1 : i32
    %13 = vector.broadcast %c1_i32 : i32 to vector<1x2xi32>
    %14 = arith.cmpi eq, %6, %13 : vector<1x2xi32>
    %cst_6 = arith.constant 0.000000e+00 : f32
    %15 = vector.broadcast %cst_6 : f32 to vector<1x2xf32>
    %16 = arith.select %14, %4, %15 : vector<1x2xi1>, vector<1x2xf32>
    %cst_7 = arith.constant dense<0.000000e+00> : vector<1xf32>
    %17 = vector.multi_reduction <add>, %16, %cst_7 [1] : vector<1x2xf32> to vector<1xf32>
    %18 = vector.shape_cast %17 : vector<1xf32> to vector<1x1xf32>
    %19 = math.sin %12 : vector<1x1xf32>
    %20 = arith.subf %18, %19 : vector<1x1xf32>
    %21 = arith.mulf %20, %20 : vector<1x1xf32>
    %22 = arith.mulf %12, %12 : vector<1x1xf32>
    %23 = arith.mulf %22, %22 : vector<1x1xf32>
    %cst_8 = arith.constant 0.00810569432 : f32
    %24 = vector.broadcast %cst_8 : f32 to vector<1x1xf32>
    %25 = arith.mulf %24, %23 : vector<1x1xf32>
    %cst_9 = arith.constant 1.000000e+00 : f32
    %26 = vector.broadcast %cst_9 : f32 to vector<1x1xf32>
    %27 = arith.mulf %26, %22 : vector<1x1xf32>
    %28 = arith.subf %25, %27 : vector<1x1xf32>
    %cst_10 = arith.constant 0.0324227773 : f32
    %29 = vector.broadcast %cst_10 : f32 to vector<1x1xf32>
    %30 = arith.mulf %28, %29 : vector<1x1xf32>
    %cst_11 = arith.constant 1.000000e+00 : f32
    %31 = vector.broadcast %cst_11 : f32 to vector<1x1xf32>
    %32 = arith.addf %30, %31 : vector<1x1xf32>
    %33 = arith.addf %21, %32 : vector<1x1xf32>
    %c0_12 = arith.constant 0 : index
    %c0_13 = arith.constant 0 : index
    %34 = vector.load %arg2[%c0_12, %c0_13] : memref<1x1xf32, #tpu.memory_space<vmem>>, vector<1x1xf32>
    tpu.vector_store %arg2[%c0_12, %c0_13], %33 {strides = array<i32>} : memref<1x1xf32, #tpu.memory_space<vmem>>, vector<1x1xf32>,
    return
  }
}

</mosaic_0001>

<llo_original>
// kernel: tpu_custom_call.1
$region0: #{tpu_custom_call.1}
  #allocation0 [shape = 'u32[]', space=smem, size = 0x4, offset = 0x4, fixed_abs, tag = 'smem constant byte address 0x4 - core index']
  #allocation1 [shape = 'u32[72,128]{1,0:T(1,128)}', space=vmem, size = 0x9000, scoped, tag = 'internal scratch']
  %s0 = inlined_call_operand.hbm [shape: f32[1,2], index: 0, kind: input, shape index: {}]
  %s1 = inlined_call_operand.hbm [shape: f32[1,2], index: 1, kind: output, shape index: {0}]
  %s2 = inlined_call_operand.hbm [shape: f32[1,1], index: 2, kind: output, shape index: {1}]
  %3 = xla_tuple %s1, %s2
  %s4 = sld [smem:[#allocation0]]
  $region26: #{tpu_custom_call.1} parent=0
    _
  %s6 = ssub.s32 1, %s4
  %s7 = scalar_select 0, %s6, %s4
  $region1: #{tpu_custom_call.1} parent=0
    #allocation2 [shape = 'u8[512]{0}', space=vmem, size = 0x400, scoped, tag = 'input window, operand 0, single buffered']
    #allocation3 [shape = 's32[1]{0}', space=sflag, size = 0x4, scoped, tag = 'scoped memory for tpu_custom_call.1']
    #allocation4 [shape = 's32[1]{0}', space=sflag, size = 0x4, scoped, tag = 'scoped memory for tpu_custom_call.1']
    #allocation5 [shape = 'u8[512]{0}', space=vmem, size = 0x400, scoped, tag = 'output window, operand 0, single buffered']
    #allocation6 [shape = 'u8[512]{0}', space=vmem, size = 0x400, scoped, tag = 'output window, operand 1, single buffered']
    #allocation7 [shape = 's32[1]{0}', space=sflag, size = 0x4, scoped, tag = 'scoped memory for tpu_custom_call.1']
    %8 = vsyncpa [#allocation3], 0
    %9 = vsyncpa [#allocation4], 0
    %10 = vsyncpa [#allocation7], 0
    // Predicated region
    $region2: #{tpu_custom_call.1} parent=1 // pred_check
      _
    $region3: #{tpu_custom_call.1} parent=1 // pred_check_branch
      %12 = sbr.rel (0) target = $region5
    $region4: #{tpu_custom_call.1} parent=1 // pred_region
      %14 = vsyncadd [#allocation3], 0
      %s16 = sshll.u32 %s0, 4
      %s17 = int_to_ptr.hbm [resolvable:$true] %s16
      %s18 = sshll.u32 [#allocation2], 4
      %s19 = int_to_ptr.vmem [resolvable:$true] %s18
      %21 = dma.hbm_to_vmem [thread:$0]  %s17, 16, %s19, [#allocation3]
    $region5: #{tpu_custom_call.1} parent=1 // pred_fallthru
      _
    // Predicated region
    $region6: #{tpu_custom_call.1} parent=1 // pred_check
      _
    $region7: #{tpu_custom_call.1} parent=1 // pred_check_branch
      %23 = sbr.rel (0) target = $region9
    $region8: #{tpu_custom_call.1} parent=1 // pred_region
      %25 = dma.done [#allocation3], 16
    $region9: #{tpu_custom_call.1} parent=1 // pred_fallthru
      _
    %v26 = vld [vmem:[#allocation2] sm:$0x1]
    %v27 = vmax.f32 %v26, -15.0
    %v28 = vmin.f32 %v27, 15.0
    %vm29 = vcmask 8192
    %30 = vst.msk [vmem:[#allocation5] sm:$0x1] %vm29, %v28
    %v31 = vlaneseq
    %v32 = vand.u32 %v31, 127
    %vm33 = vcmp.eq.s32.totalorder %v32, 0
    %v34 = vsel %vm33, %v28, 0.0
    %v35 = vsel %vm29, %v34, 0.0
    %36 = vadd.xlane.f32.xlu0 %v35
    %v37 = vpop.xlane.xlu0 %36
    %vm38 = vcmp.eq.s32.totalorder %v32, 1
    %v39 = vsel %vm38, %v28, 0.0
    %v40 = vsel %vm29, %v39, 0.0
    %41 = vadd.xlane.f32.xlu0 %v40
    %v42 = vpop.xlane.xlu0 %41
    %v43 = vand.u32 2147483647, %v37
    %vm44 = vcmp.le.f32.partialorder %v43, 0.7853982
    %vm45 = vcmp.lt.s32.totalorder %v37, 0
    %v46 = vand.u32 %v37, 2139095040
    %v47 = vshrl.u32 %v46, 23
    %v48 = vsub.s32 %v47, 127
    %v49 = vand.u32 2147483647, %v37
    %v50 = vand.u32 %v49, 8388607
    %v51 = vor.u32 %v50, 8388608
    %v52 = vsub.s32 0, %v51
    %v53 = vadd.s32 %v48, 1
    %vm54 = vcmp.gt.s32.totalorder %v53, 0
    %v55 = vsel %vm54, %v53, 0
    %v56 = vshrl.u32 %v55, 5
    %v57 = vand.u32 %v55, 31
    %v58 = vsub.s32 32, %v57
    %v59 = vshrl.u32 683565275, %v58
    %v60 = vshll.u32 683565275, %v57
    %v61 = vshrl.u32 2475754826, %v58
    %v62 = vor.u32 %v60, %v61
    %v63 = vshll.u32 2475754826, %v57
    %v64 = vshrl.u32 2131351028, %v58
    %v65 = vor.u32 %v63, %v64
    %v66 = vshll.u32 2131351028, %v57
    %v67 = vshrl.u32 2102212464, %v58
    %v68 = vor.u32 %v66, %v67
    %v69 = vshll.u32 2102212464, %v57
    %v70 = vshrl.u32 920167782, %v58
    %v71 = vor.u32 %v69, %v70
    %v72 = vshll.u32 920167782, %v57
    %v73 = vshrl.u32 1326507024, %v58
    %v74 = vor.u32 %v72, %v73
    %vm75 = vcmp.lt.s32.totalorder %v56, 1
    %vm76 = vcmp.lt.s32.totalorder %v56, 2
    %vm77 = vcmp.lt.s32.totalorder %v56, 3
    %vm78 = vcmp.lt.s32.totalorder %v56, 4
    %v79 = vsel %vm75, %v59, %v62
    %v80 = vsel %vm78, %v68, 2102212464
    %v81 = vsel %vm77, %v65, %v80
    %v82 = vsel %vm76, %v79, %v81
    %v83 = vsel %vm75, %v62, %v65
    %v84 = vsel %vm78, %v71, 920167782
    %v85 = vsel %vm77, %v68, %v84
    %v86 = vsel %vm76, %v83, %v85
    %v87 = vsel %vm75, %v65, %v68
    %v88 = vsel %vm78, %v74, 1326507024
    %v89 = vsel %vm77, %v71, %v88
    %v90 = vsel %vm76, %v87, %v89
    %v91 = vshll.u32 %v51, 8
    %v92 = vand.u32 %v91, 65535
    %v93 = vshrl.u32 %v91, 16
    %v94 = vand.u32 %v90, 65535
    %v95 = vshrl.u32 %v90, 16
    %v96 = vmul.u32 %v92, %v94
    %v97 = vmul.u32 %v92, %v95
    %v98 = vmul.u32 %v93, %v94
    %v99 = vmul.u32 %v93, %v95
    %v100 = vshll.u32 %v97, 16
    %v101 = vshrl.u32 %v97, 16
    %v102 = vshll.u32 %v98, 16
    %v103 = vshrl.u32 %v98, 16
    %vm104 = vc.u32 %v96, %v100
    %v105 = vsel %vm104, 1, 0
    %v106 = vadd.s32 %v96, %v100
    %v107 = vadd.s32 %v99, %v105
    %vm108 = vc.u32 %v106, %v102
    %v109 = vsel %vm108, 1, 0
    %v110 = vadd.s32 %v106, %v102
    %v111 = vadd.s32 %v107, %v109
    %v112 = vadd.s32 %v111, %v101
    %v113 = vadd.s32 %v112, %v103
    %v114 = vand.u32 %v91, 65535
    %v115 = vshrl.u32 %v91, 16
    %v116 = vand.u32 %v86, 65535
    %v117 = vshrl.u32 %v86, 16
    %v118 = vmul.u32 %v114, %v116
    %v119 = vmul.u32 %v114, %v117
    %v120 = vmul.u32 %v115, %v116
    %v121 = vmul.u32 %v115, %v117
    %v122 = vshll.u32 %v119, 16
    %v123 = vshrl.u32 %v119, 16
    %v124 = vshll.u32 %v120, 16
    %v125 = vshrl.u32 %v120, 16
    %vm126 = vc.u32 %v118, %v122
    %v127 = vsel %vm126, 1, 0
    %v128 = vadd.s32 %v118, %v122
    %v129 = vadd.s32 %v121, %v127
    %vm130 = vc.u32 %v128, %v124
    %v131 = vsel %vm130, 1, 0
    %v132 = vadd.s32 %v128, %v124
    %v133 = vadd.s32 %v129, %v131
    %v134 = vadd.s32 %v133, %v123
    %v135 = vadd.s32 %v134, %v125
    %v136 = vmul.u32 %v91, %v82
    %v137 = vadd.s32 %v113, %v132
    %vm138 = vc.u32 %v113, %v132
    %v139 = vadd.s32 %v135, 1
    %v140 = vsel %vm138, %v139, %v135
    %v141 = vadd.s32 %v136, %v140
    %v142 = vadd.s32 %v141, 536870912
    %v143 = vshrl.u32 %v142, 30
    %v144 = vshll.u32 %v143, 30
    %v145 = vsub.s32 %v141, %v144
    %vm146 = vcmp.lt.s32.totalorder %v145, 0
    %v147 = vsub.s32 0, %v145
    %v148 = vsel %vm146, %v147, %v145
    %v149 = vclz %v148
    %v150 = vsub.s32 %v149, 2
    %vm151 = vcmp.gt.s32.totalorder 0, %v150
    %v152 = vsel %vm151, 0, %v150
    %v153 = vsub.s32 32, %v152
    %v154 = vshll.u32 %v145, %v152
    %v155 = vshrl.u32 %v137, %v153
    %v156 = vor.u32 %v154, %v155
    %v157 = vsub.s32 4294967266, %v152
    %v158 = vadd.s32 %v157, 127
    %v159 = vshll.u32 %v158, 23
    %v160 = vor.u32 4788187, %v159
    %v161 = vand.u32 2147483647, %v160
    %v163 = vcvt.s32.f32 %v156
    %v164 = vmul.f32 %v163, %v161
    %v165 = vxor.u32 %v164, 2147483648
    %v166 = vsel %vm45, %v165, %v164
    %v167 = vsub.s32 4, %v143
    %v168 = vsel %vm45, %v167, %v143
    %v169 = vsel %vm44, %v37, %v166
    %v170 = vsel %vm44, 0, %v168
    %v171 = vmul.f32 %v169, %v169
    %v172 = vmul.f32 %v171, -0.001358992
    %v173 = vadd.f32 %v172, 0.041655596
    %v174 = vmul.f32 %v171, %v173
    %v175 = vadd.f32 %v174, -0.4999988
    %v176 = vmul.f32 %v171, %v175
    %v177 = vadd.f32 1.0, %v176
    %v178 = vmul.f32 %v169, %v169
    %v179 = vmul.f32 %v178, -0.00019511016
    %v180 = vadd.f32 %v179, 0.008332121
    %v181 = vmul.f32 %v178, %v180
    %v182 = vadd.f32 %v181, -0.16666654
    %v183 = vmul.f32 %v178, %v182
    %v184 = vadd.f32 %v183, 1.0
    %v185 = vmul.f32 %v184, %v169
    %vm186 = vweird.f32 %v37
    %v187 = vadd.s32 %v170, 3
    %v188 = vand.u32 %v187, 3
    %vm189 = vcmp.lt.s32.totalorder %v188, 2
    %vm190 = vcmp.eq.s32.totalorder %v188, 0
    %v191 = vxor.u32 %v185, 2147483648
    %v192 = vsel %vm190, %v177, %v191
    %vm193 = vcmp.eq.s32.totalorder %v188, 2
    %v194 = vxor.u32 %v177, 2147483648
    %v195 = vsel %vm193, %v194, %v185
    %v196 = vsel %vm189, %v192, %v195
    %v197 = vsel %vm186, nan, %v196
    %v198 = vsub.f32 %v42, %v197
    %v199 = vmul.f32 %v198, %v198
    %v200 = vmul.f32 %v37, %v37
    %v201 = vmul.f32 %v200, %v200
    %v202 = vmul.f32 %v201, 0.008105694
    %v203 = vsub.f32 %v202, %v200
    %v204 = vmul.f32 %v203, 0.032422777
    %v205 = vadd.f32 %v204, 1.0
    %v206 = vadd.f32 %v199, %v205
    %vm207 = vcmask 0
    %208 = vst.msk [vmem:[#allocation6] sm:$0x1] %vm207, %v206
    // Predicated region
    $region10: #{tpu_custom_call.1} parent=1 // pred_check
      _
    $region11: #{tpu_custom_call.1} parent=1 // pred_check_branch
      %210 = sbr.rel (0) target = $region13
    $region12: #{tpu_custom_call.1} parent=1 // pred_region
      %212 = vsyncadd [#allocation4], 0
      %s214 = sshll.u32 [#allocation5], 4
      %s215 = int_to_ptr.vmem [resolvable:$true] %s214
      %s216 = sshll.u32 %s1, 4
      %s217 = int_to_ptr.hbm [resolvable:$true] %s216
      %219 = dma.vmem_to_hbm [thread:$0]  %s215, 16, %s217, [#allocation4]
    $region13: #{tpu_custom_call.1} parent=1 // pred_fallthru
      _
    // Predicated region
    $region14: #{tpu_custom_call.1} parent=1 // pred_check
      _
    $region15: #{tpu_custom_call.1} parent=1 // pred_check_branch
      %221 = sbr.rel (0) target = $region17
    $region16: #{tpu_custom_call.1} parent=1 // pred_region
      %223 = vsyncadd [#allocation7], 0
      %s225 = sshll.u32 [#allocation6], 4
      %s226 = int_to_ptr.vmem [resolvable:$true] %s225
      %s227 = sshll.u32 %s2, 4
      %s228 = int_to_ptr.hbm [resolvable:$true] %s227
      %230 = dma.vmem_to_hbm [thread:$0]  %s226, 16, %s228, [#allocation7]
    $region17: #{tpu_custom_call.1} parent=1 // pred_fallthru
      _
    // Predicated region
    $region18: #{tpu_custom_call.1} parent=1 // pred_check
      _
    $region19: #{tpu_custom_call.1} parent=1 // pred_check_branch
      %232 = sbr.rel (0) target = $region21
    $region20: #{tpu_custom_call.1} parent=1 // pred_region
      %234 = dma.done [#allocation4], 16
    $region21: #{tpu_custom_call.1} parent=1 // pred_fallthru
      _
    // Predicated region
    $region22: #{tpu_custom_call.1} parent=1 // pred_check
      _
    $region23: #{tpu_custom_call.1} parent=1 // pred_check_branch
      %236 = sbr.rel (0) target = $region25
    $region24: #{tpu_custom_call.1} parent=1 // pred_region
      %238 = dma.done [#allocation7], 16
    $region25: #{tpu_custom_call.1} parent=1 // pred_fallthru
      _
    %239 = vsyncpa [#allocation3], 1
    %240 = vsyncpa [#allocation4], 1
    %241 = vsyncpa [#allocation7], 1

</llo_original>
